<compile_context>
chip_gen: v7x
topology: tpu7x:2x2x1
jax: 0.10.0
libtpu: 0.0.40
codegen_flags: <defaults>
</compile_context>

<pallas_src>
import functools

import jax
import jax.numpy as jnp
from jax.experimental import pallas as pl
from jax.experimental.pallas import tpu as pltpu


def _embed_sum_kernel(idx_ref, table_ref, out_ref, *, fold, num_cat, k_pad):
    """idx_ref:   [rows, fold*num_cat] int32 (vocab-offset indices; column
                   k*num_cat + i is category i of the k-th folded sample)
       table_ref: [fold*k_pad, fold*D] float32 block-diagonal fused table
       out_ref:   [rows, fold*D] float32 (lane-dense: fold*D == 128 when fold>1)
    """
    rows = idx_ref.shape[0]

    # One-hot comparisons only over the K_pad-wide sub-block each index can
    # actually hit (keeps VPU work minimal); accumulate in int32 and convert
    # to f32 once per sub-block.
    iota = jax.lax.broadcasted_iota(jnp.int32, (rows, k_pad), 1)
    subs = []
    for k in range(fold):                      # fold, num_cat small & static
        hot = jnp.zeros((rows, k_pad), jnp.int32)
        for i in range(num_cat):
            col = k * num_cat + i
            hot = hot + (idx_ref[:, col:col + 1] == iota).astype(jnp.int32)
        subs.append(hot.astype(jnp.float32))

    # Lane-concat at 128-aligned boundaries (cheap vreg placement).
    multihot = subs[0] if fold == 1 else jnp.concatenate(subs, axis=1)

    # Single MXU matmul: [rows, fold*K_pad] x [fold*K_pad, fold*D].
    out_ref[...] = jnp.dot(multihot, table_ref[...],
                           preferred_element_type=jnp.float32)


def embedding_layer_pallas(x_idx, fused_table, categorical, *, tile_m=2048):
    """x_idx:       [B, T, N, num_cat] integer indices (raw, per-category)
       fused_table: [K_pad, D] float32 (concatenated, zero-padded tables)
       categorical: list of per-category vocab sizes (defines the offsets)
       returns      [B, T, N, D] float32
    """
    B, T, N, num_cat = x_idx.shape
    assert num_cat == len(categorical)
    k_pad, D = fused_table.shape
    M = B * T * N

    # How many consecutive samples to fold into the lane dim of the output.
    fold = 128 // D if (D < 128 and 128 % D == 0) else 1

    # Offsets into the fused vocabulary (category i occupies rows
    # [offset_i, offset_i + categorical[i]) of the fused table).
    offsets = jnp.asarray([sum(categorical[:i]) for i in range(num_cat)],
                          dtype=jnp.int32)
    idx_flat = x_idx.reshape(M, num_cat).astype(jnp.int32) + offsets[None, :]

    # Block-diagonal table so the MXU emits the folded, lane-dense layout
    # directly: block k maps sub-vocab k to output lanes [k*D, (k+1)*D).
    if fold > 1:
        table_bd = jnp.zeros((fold * k_pad, fold * D), jnp.float32)
        for k in range(fold):
            table_bd = table_bd.at[k * k_pad:(k + 1) * k_pad,
                                   k * D:(k + 1) * D].set(fused_table)
    else:
        table_bd = fused_table

    # Tile selection: big tiles amortize per-grid-step overhead, but cap so
    # the "parallel" axis keeps >= 2 grid steps (megacore).  Must be a
    # multiple of 8*fold so the folded row count stays sublane-aligned.
    align = 8 * fold
    half = -(-M // 2)                                     # ceil(M / 2)
    tile_m = min(tile_m, max(align, ((half + align - 1) // align) * align))
    tile_m = ((tile_m + align - 1) // align) * align
    grid_m = pl.cdiv(M, tile_m)
    m_pad = grid_m * tile_m
    if m_pad != M:                                        # tail: pad, compute, slice
        idx_flat = jnp.pad(idx_flat, ((0, m_pad - M), (0, 0)))

    rows_tile = tile_m // fold
    idx_grouped = idx_flat.reshape(m_pad // fold, fold * num_cat)

    cost = pl.CostEstimate(
        flops=2 * (m_pad // fold) * (fold * k_pad) * (fold * D),
        transcendentals=0,
        bytes_accessed=(m_pad * num_cat * 4) + (m_pad * D * 4)
                       + (fold * k_pad * fold * D * 4),
    )

    kernel = functools.partial(_embed_sum_kernel,
                               fold=fold, num_cat=num_cat, k_pad=k_pad)

    out_grouped = pl.pallas_call(
        kernel,
        out_shape=jax.ShapeDtypeStruct((m_pad // fold, fold * D), jnp.float32),
        grid_spec=pltpu.PrefetchScalarGridSpec(
            num_scalar_prefetch=0,
            grid=(grid_m,),
            in_specs=[
                # per-tile folded indices
                pl.BlockSpec((rows_tile, fold * num_cat), lambda m: (m, 0)),
                # whole block-diagonal fused table; constant index_map ->
                # DMA'd once and kept resident across the grid.
                pl.BlockSpec((fold * k_pad, fold * D), lambda m: (0, 0)),
            ],
            out_specs=pl.BlockSpec((rows_tile, fold * D), lambda m: (m, 0)),
        ),
        compiler_params=pltpu.CompilerParams(
            dimension_semantics=("parallel",)),
        cost_estimate=cost,
    )(idx_grouped, table_bd)

    # [m_pad//fold, fold*D] -> [m_pad, D] is a contiguous (free) reshape.
    out_flat = out_grouped.reshape(m_pad, D)[:M]
    return out_flat.reshape(B, T, N, D)


def make_fused_embedding_table(key, categorical, dim_categorical):
    """Per-category N(0,1) tables (nn.Embedding default init), concatenated
    along the vocab axis and zero-padded to a lane-aligned total size."""
    tabs = []
    for cat in categorical:
        key, sub = jax.random.split(key)
        tabs.append(jax.random.normal(sub, (cat, dim_categorical),
                                      dtype=jnp.float32))
    fused = jnp.concatenate(tabs, axis=0)                 # [total_vocab, D]
    total = fused.shape[0]
    k_pad = max(128, ((total + 127) // 128) * 128)        # lane-align contraction
    fused = jnp.pad(fused, ((0, k_pad - total), (0, 0)))
    return fused, tabs


def embedding_layer_reference(x_idx, tables):
    """Pure-JAX reference of the PyTorch forward (per-table gather + sum)."""
    out = 0.0
    for i, tab in enumerate(tables):
        out = out + jnp.take(tab, x_idx[..., i], axis=0)
    return out.astype(jnp.float32)


if __name__ == "__main__":
    # small shapes consistent with the module's forward: x[B, T, N, num_cat]
    B, T, N = 2, 8, 16
    categorical = [7, 5, 11]          # vocab size per categorical feature
    dim_categorical = 32
    num_cat = len(categorical)

    key = jax.random.PRNGKey(0)
    k_tab, k_idx = jax.random.split(key)

    fused_table, tables = make_fused_embedding_table(
        k_tab, categorical, dim_categorical)

    # integer feature indices in valid ranges
    idx_keys = jax.random.split(k_idx, num_cat)
    idx_cols = [
        jax.random.randint(idx_keys[i], (B, T, N), 0, categorical[i],
                           dtype=jnp.int32)
        for i in range(num_cat)
    ]
    x = jnp.stack(idx_cols, axis=-1)   # [B, T, N, num_cat] int32

    out = embedding_layer_pallas(x, fused_table, categorical)
    out = jax.block_until_ready(out)

    # correctness check against the pure-JAX reference of the PyTorch forward
    ref = embedding_layer_reference(x, tables)
    assert out.shape == (B, T, N, dim_categorical)
    assert out.dtype == jnp.float32
    assert jnp.allclose(out, ref, atol=1e-5, rtol=1e-5)

    print("KERNEL_OK")
</pallas_src>

<mosaic_0001>
module attributes {stable_mosaic.version = 11 : i64} {
  func.func @_embed_sum_kernel(%arg0: i32, %arg1: memref<32x12xi32, #tpu.memory_space<vmem>>, %arg2: memref<512x128xf32, #tpu.memory_space<vmem>>, %arg3: memref<32x128xf32, #tpu.memory_space<vmem>>) attributes {dimension_semantics = [#tpu.dimension_semantics<parallel>], iteration_bounds = array<i64: 2>, scalar_prefetch = 0 : i64, scratch_operands = 0 : i64, tpu.core_type = #tpu.core_type<tc>, window_params = [{transform_indices = @transform_0, window_bounds = array<i64: 32, 12>}, {pipeline_mode = #tpu.pipeline_mode<synchronous>, transform_indices = @transform_1, window_bounds = array<i64: 512, 128>}, {transform_indices = @transform_2, window_bounds = array<i64: 32, 128>}]} {
    %0 = tpu.iota {dimensions = array<i32: 1>} : vector<32x128xi32>
    %c0_i32 = arith.constant 0 : i32
    %1 = vector.broadcast %c0_i32 : i32 to vector<32x128xi32>
    %c0 = arith.constant 0 : index
    %c0_0 = arith.constant 0 : index
    %2 = vector.load %arg1[%c0, %c0_0] : memref<32x12xi32, #tpu.memory_space<vmem>>, vector<32x1xi32>
    %3 = vector.broadcast %2 : vector<32x1xi32> to vector<32x128xi32>
    %4 = arith.cmpi eq, %3, %0 : vector<32x128xi32>
    %5 = arith.extui %4 : vector<32x128xi1> to vector<32x128xi32>
    %6 = arith.addi %1, %5 : vector<32x128xi32>
    %c0_1 = arith.constant 0 : index
    %c1 = arith.constant 1 : index
    %7 = vector.load %arg1[%c0_1, %c1] : memref<32x12xi32, #tpu.memory_space<vmem>>, vector<32x1xi32>
    %8 = vector.broadcast %7 : vector<32x1xi32> to vector<32x128xi32>
    %9 = arith.cmpi eq, %8, %0 : vector<32x128xi32>
    %10 = arith.extui %9 : vector<32x128xi1> to vector<32x128xi32>
    %11 = arith.addi %6, %10 : vector<32x128xi32>
    %c0_2 = arith.constant 0 : index
    %c2 = arith.constant 2 : index
    %12 = vector.load %arg1[%c0_2, %c2] : memref<32x12xi32, #tpu.memory_space<vmem>>, vector<32x1xi32>
    %13 = vector.broadcast %12 : vector<32x1xi32> to vector<32x128xi32>
    %14 = arith.cmpi eq, %13, %0 : vector<32x128xi32>
    %15 = arith.extui %14 : vector<32x128xi1> to vector<32x128xi32>
    %16 = arith.addi %11, %15 : vector<32x128xi32>
    %17 = arith.sitofp %16 : vector<32x128xi32> to vector<32x128xf32>
    %c0_i32_3 = arith.constant 0 : i32
    %18 = vector.broadcast %c0_i32_3 : i32 to vector<32x128xi32>
    %c0_4 = arith.constant 0 : index
    %c3 = arith.constant 3 : index
    %19 = vector.load %arg1[%c0_4, %c3] : memref<32x12xi32, #tpu.memory_space<vmem>>, vector<32x1xi32>
    %20 = vector.broadcast %19 : vector<32x1xi32> to vector<32x128xi32>
    %21 = arith.cmpi eq, %20, %0 : vector<32x128xi32>
    %22 = arith.extui %21 : vector<32x128xi1> to vector<32x128xi32>
    %23 = arith.addi %18, %22 : vector<32x128xi32>
    %c0_5 = arith.constant 0 : index
    %c4 = arith.constant 4 : index
    %24 = vector.load %arg1[%c0_5, %c4] : memref<32x12xi32, #tpu.memory_space<vmem>>, vector<32x1xi32>
    %25 = vector.broadcast %24 : vector<32x1xi32> to vector<32x128xi32>
    %26 = arith.cmpi eq, %25, %0 : vector<32x128xi32>
    %27 = arith.extui %26 : vector<32x128xi1> to vector<32x128xi32>
    %28 = arith.addi %23, %27 : vector<32x128xi32>
    %c0_6 = arith.constant 0 : index
    %c5 = arith.constant 5 : index
    %29 = vector.load %arg1[%c0_6, %c5] : memref<32x12xi32, #tpu.memory_space<vmem>>, vector<32x1xi32>
    %30 = vector.broadcast %29 : vector<32x1xi32> to vector<32x128xi32>
    %31 = arith.cmpi eq, %30, %0 : vector<32x128xi32>
    %32 = arith.extui %31 : vector<32x128xi1> to vector<32x128xi32>
    %33 = arith.addi %28, %32 : vector<32x128xi32>
    %34 = arith.sitofp %33 : vector<32x128xi32> to vector<32x128xf32>
    %c0_i32_7 = arith.constant 0 : i32
    %35 = vector.broadcast %c0_i32_7 : i32 to vector<32x128xi32>
    %c0_8 = arith.constant 0 : index
    %c6 = arith.constant 6 : index
    %36 = vector.load %arg1[%c0_8, %c6] : memref<32x12xi32, #tpu.memory_space<vmem>>, vector<32x1xi32>
    %37 = vector.broadcast %36 : vector<32x1xi32> to vector<32x128xi32>
    %38 = arith.cmpi eq, %37, %0 : vector<32x128xi32>
    %39 = arith.extui %38 : vector<32x128xi1> to vector<32x128xi32>
    %40 = arith.addi %35, %39 : vector<32x128xi32>
    %c0_9 = arith.constant 0 : index
    %c7 = arith.constant 7 : index
    %41 = vector.load %arg1[%c0_9, %c7] : memref<32x12xi32, #tpu.memory_space<vmem>>, vector<32x1xi32>
    %42 = vector.broadcast %41 : vector<32x1xi32> to vector<32x128xi32>
    %43 = arith.cmpi eq, %42, %0 : vector<32x128xi32>
    %44 = arith.extui %43 : vector<32x128xi1> to vector<32x128xi32>
    %45 = arith.addi %40, %44 : vector<32x128xi32>
    %c0_10 = arith.constant 0 : index
    %c8 = arith.constant 8 : index
    %46 = vector.load %arg1[%c0_10, %c8] : memref<32x12xi32, #tpu.memory_space<vmem>>, vector<32x1xi32>
    %47 = vector.broadcast %46 : vector<32x1xi32> to vector<32x128xi32>
    %48 = arith.cmpi eq, %47, %0 : vector<32x128xi32>
    %49 = arith.extui %48 : vector<32x128xi1> to vector<32x128xi32>
    %50 = arith.addi %45, %49 : vector<32x128xi32>
    %51 = arith.sitofp %50 : vector<32x128xi32> to vector<32x128xf32>
    %c0_i32_11 = arith.constant 0 : i32
    %52 = vector.broadcast %c0_i32_11 : i32 to vector<32x128xi32>
    %c0_12 = arith.constant 0 : index
    %c9 = arith.constant 9 : index
    %53 = vector.load %arg1[%c0_12, %c9] : memref<32x12xi32, #tpu.memory_space<vmem>>, vector<32x1xi32>
    %54 = vector.broadcast %53 : vector<32x1xi32> to vector<32x128xi32>
    %55 = arith.cmpi eq, %54, %0 : vector<32x128xi32>
    %56 = arith.extui %55 : vector<32x128xi1> to vector<32x128xi32>
    %57 = arith.addi %52, %56 : vector<32x128xi32>
    %c0_13 = arith.constant 0 : index
    %c10 = arith.constant 10 : index
    %58 = vector.load %arg1[%c0_13, %c10] : memref<32x12xi32, #tpu.memory_space<vmem>>, vector<32x1xi32>
    %59 = vector.broadcast %58 : vector<32x1xi32> to vector<32x128xi32>
    %60 = arith.cmpi eq, %59, %0 : vector<32x128xi32>
    %61 = arith.extui %60 : vector<32x128xi1> to vector<32x128xi32>
    %62 = arith.addi %57, %61 : vector<32x128xi32>
    %c0_14 = arith.constant 0 : index
    %c11 = arith.constant 11 : index
    %63 = vector.load %arg1[%c0_14, %c11] : memref<32x12xi32, #tpu.memory_space<vmem>>, vector<32x1xi32>
    %64 = vector.broadcast %63 : vector<32x1xi32> to vector<32x128xi32>
    %65 = arith.cmpi eq, %64, %0 : vector<32x128xi32>
    %66 = arith.extui %65 : vector<32x128xi1> to vector<32x128xi32>
    %67 = arith.addi %62, %66 : vector<32x128xi32>
    %68 = arith.sitofp %67 : vector<32x128xi32> to vector<32x128xf32>
    %69 = tpu.concatenate %17, %34, %51, %68 in 1 : vector<32x128xf32>, vector<32x128xf32>, vector<32x128xf32>, vector<32x128xf32> -> vector<32x512xf32>
    %c0_15 = arith.constant 0 : index
    %c0_16 = arith.constant 0 : index
    %70 = vector.load %arg2[%c0_15, %c0_16] : memref<512x128xf32, #tpu.memory_space<vmem>>, vector<512x128xf32>
    %cst = arith.constant dense<0.000000e+00> : vector<32x128xf32>
    %71 = tpu.matmul %69, %70, %cst {dimension_numbers = #tpu.dot_dimension_numbers<[1], [0], [0], [1], [0, 0, 1, 1], [], []>} : vector<32x512xf32>, vector<512x128xf32>, vector<32x128xf32> -> vector<32x128xf32>
    %c0_17 = arith.constant 0 : index
    %c0_18 = arith.constant 0 : index
    %72 = vector.load %arg3[%c0_17, %c0_18] : memref<32x128xf32, #tpu.memory_space<vmem>>, vector<32x128xf32>
    tpu.vector_store %arg3[%c0_17, %c0_18], %71 {strides = array<i32>} : memref<32x128xf32, #tpu.memory_space<vmem>>, vector<32x128xf32>,
    return
  }
  func.func @transform_0(%arg0: i32) -> (i32, i32) {
    %c0_i32 = arith.constant 0 : i32
    %c0_i32_0 = arith.constant 0 : i32
    return %arg0, %c0_i32 : i32, i32
  }
  func.func @transform_1(%arg0: i32) -> (i32, i32) {
    %c0_i32 = arith.constant 0 : i32
    %c0_i32_0 = arith.constant 0 : i32
    %c0_i32_1 = arith.constant 0 : i32
    return %c0_i32, %c0_i32_0 : i32, i32
  }
  func.func @transform_2(%arg0: i32) -> (i32, i32) {
    %c0_i32 = arith.constant 0 : i32
    %c0_i32_0 = arith.constant 0 : i32
    return %arg0, %c0_i32 : i32, i32
  }
}

</mosaic_0001>

<llo_original>
// kernel: tpu_custom_call.1
$region0: #{tpu_custom_call.1}
  #allocation0 [shape = 'u32[]', space=smem, size = 0x4, offset = 0x4, fixed_abs, tag = 'smem constant byte address 0x4 - core index']
  #allocation1 [shape = 'u32[144,128]{1,0:T(1,128)}', space=vmem, size = 0x12000, scoped, tag = 'internal scratch']
  %s0 = inlined_call_operand.vmem [shape: s32[64,12], index: 0, kind: input, shape index: {}]
  %s1 = inlined_call_operand.hbm [shape: f32[512,128], index: 1, kind: input, shape index: {}]
  %s2 = inlined_call_operand.hbm [shape: f32[64,128], index: 2, kind: output, shape index: {}]
  %s3 = sld [smem:[#allocation0]]
  $region45: #{tpu_custom_call.1} parent=0
    _
  %s5 = ssub.s32 1, %s3
  %s6 = scalar_select 0, %s5, %s3
  $region1: #{tpu_custom_call.1} parent=0
    #allocation2 [shape = 'u8[262144]{0}', space=vmem, size = 0x40000, scoped, tag = 'input window, operand 1, single buffered']
    #allocation3 [shape = 's32[2]{0}', space=sflag, size = 0x8, scoped, tag = 'scoped memory for tpu_custom_call.1']
    #allocation4 [shape = 's32[2]{0}', space=sflag, size = 0x8, scoped, tag = 'scoped memory for tpu_custom_call.1']
    #allocation5 [shape = 'u8[32768]{0}', space=vmem, size = 0x8000, scoped, tag = 'output window, operand 0']
    %7 = vsyncpa [#allocation3], 0
    %8 = vsyncpa [#allocation4], 0
    %s9 = scalar_lea.sflag [#allocation4], 1
    %10 = vsyncpa %s9, 0
    loop: start=0, step=1, limit=4
    $region2: #{tpu_custom_call.1} parent=1 // loop_pre_header
      _
    $region3: #{tpu_custom_call.1} parent=1 // loop_header
      %s12 = sphi 0, %s16
      %p13 = scmp.ge.s32.totalorder %s12, 4
      %s22 = sphi 0, %s24
      %s25 = sphi 0, %s22
      %s26 = sphi 0, %s25
      %s42 = sphi 0, %s26
      %s46 = sphi 0, %s46
      %s48 = sphi 0, %s46
      %s49 = sphi 0, %s48
      %s63 = sphi 0, %s49
      %s69 = sphi 0, %s71
      %s72 = sphi 0, %s69
      %s73 = sphi 0, %s72
      %s89 = sphi 0, %s73
    $region4: #{tpu_custom_call.1} parent=1 // loop_header_branch
      %15 = sbr.rel (%p13) target = $region8
    $region5: #{tpu_custom_call.1} parent=1 // loop_body
      %s17 = ssub.s32 %s12, 1
      %s18 = ssub.s32 %s12, 2
      %s19 = sadd.s32 %s12, 1
      %s20 = ssub.s32 %s12, %s19
      %p21 = scmp.eq.s32.totalorder %s20, 0
      %s23 = sadd.s32 %s22, 1
      %s24 = scalar_select %p21, %s22, %s23
      %p27 = pneg %p21
      %p28 = scmp.eq.s32.totalorder %s12, 1
      %p29 = por %p27, %p28
      %p30 = scmp.ne.s32.totalorder %s22, %s25
      %p31 = scmp.eq.s32.totalorder %s12, 0
      %p32 = por %p30, %p31
      %p33 = scmp.ne.s32.totalorder %s22, %s25
      %p34 = scmp.eq.s32.totalorder %s17, 1
      %p35 = por %p33, %p34
      %p36 = scmp.ne.s32.totalorder %s25, %s26
      %p37 = scmp.eq.s32.totalorder %s17, 0
      %p38 = por %p36, %p37
      %p39 = scmp.ne.s32.totalorder %s25, %s26
      %p40 = scmp.eq.s32.totalorder %s18, 1
      %p41 = por %p39, %p40
      %p43 = scmp.ne.s32.totalorder %s26, %s42
      %p44 = scmp.eq.s32.totalorder %s18, 0
      %p45 = por %p43, %p44
      %s47 = sadd.s32 %s46, 1
      %p50 = scmp.eq.s32.totalorder %s12, 1
      %p51 = scmp.ne.s32.totalorder %s46, %s48
      %p52 = scmp.eq.s32.totalorder %s12, 0
      %p53 = por %p51, %p52
      %p54 = scmp.ne.s32.totalorder %s46, %s48
      %p55 = scmp.eq.s32.totalorder %s17, 1
      %p56 = por %p54, %p55
      %p57 = scmp.ne.s32.totalorder %s48, %s49
      %p58 = scmp.eq.s32.totalorder %s17, 0
      %p59 = por %p57, %p58
      %p60 = scmp.ne.s32.totalorder %s48, %s49
      %p61 = scmp.eq.s32.totalorder %s18, 1
      %p62 = por %p60, %p61
      %p64 = scmp.ne.s32.totalorder %s49, %s63
      %p65 = scmp.eq.s32.totalorder %s18, 0
      %p66 = por %p64, %p65
      %s67 = ssub.s32 %s12, %s19
      %p68 = scmp.eq.s32.totalorder %s67, 0
      %s70 = sadd.s32 %s69, 1
      %s71 = scalar_select %p68, %s69, %s70
      %p74 = pneg %p68
      %p75 = scmp.eq.s32.totalorder %s12, 1
      %p76 = por %p74, %p75
      %p77 = scmp.ne.s32.totalorder %s69, %s72
      %p78 = scmp.eq.s32.totalorder %s12, 0
      %p79 = por %p77, %p78
      %p80 = scmp.ne.s32.totalorder %s69, %s72
      %p81 = scmp.eq.s32.totalorder %s17, 1
      %p82 = por %p80, %p81
      %p83 = scmp.ne.s32.totalorder %s72, %s73
      %p84 = scmp.eq.s32.totalorder %s17, 0
      %p85 = por %p83, %p84
      %p86 = scmp.ne.s32.totalorder %s72, %s73
      %p87 = scmp.eq.s32.totalorder %s18, 1
      %p88 = por %p86, %p87
      %p90 = scmp.ne.s32.totalorder %s73, %s89
      %p91 = scmp.eq.s32.totalorder %s18, 0
      %p92 = por %p90, %p91
      %p93 = scmp.le.s32.totalorder 1, %s12
      %p94 = scmp.lt.s32.totalorder %s12, 3
      %p95 = pnand %p93, %p94
      %p96 = pneg %p95
      // Predicated region
      $region9: #{tpu_custom_call.1} parent=5 // pred_check
        _
      $region10: #{tpu_custom_call.1} parent=5 // pred_check_branch
        %98 = sbr.rel (%p95) target = $region12
      $region11: #{tpu_custom_call.1} parent=5 // pred_region
        %s99 = ssub.s32 %s12, 1
        // Predicated region
        $region13: #{tpu_custom_call.1} parent=11 // pred_check
          %p100 = pneg %p59
        $region14: #{tpu_custom_call.1} parent=11 // pred_check_branch
          %102 = sbr.rel (%p100) target = $region16
        $region15: #{tpu_custom_call.1} parent=11 // pred_region
          %s104 = ssub.s32 8192, 8192
          %105 = vsyncadd [#allocation3], %s104
          %s106 = sshll.u32 [#allocation2], 4
          %s107 = int_to_ptr.vmem [resolvable:$true] %s106
          %112 = dma.hbm_to_vmem [thread:$0]  %s1, 8192, %s107, [#allocation3], 128, 128, 8
        $region16: #{tpu_custom_call.1} parent=11 // pred_fallthru
          _
      $region12: #{tpu_custom_call.1} parent=5 // pred_fallthru
        _
      %p113 = scmp.lt.s32.totalorder %s12, 2
      // Predicated region
      $region17: #{tpu_custom_call.1} parent=5 // pred_check
        %p114 = pneg %p113
      $region18: #{tpu_custom_call.1} parent=5 // pred_check_branch
        %116 = sbr.rel (%p114) target = $region20
      $region19: #{tpu_custom_call.1} parent=5 // pred_region
        // Predicated region
        $region21: #{tpu_custom_call.1} parent=19 // pred_check
          %p117 = pneg %p32
        $region22: #{tpu_custom_call.1} parent=19 // pred_check_branch
          %119 = sbr.rel (%p117) target = $region24
        $region23: #{tpu_custom_call.1} parent=19 // pred_region
          %s120 = smul.u32 4, %s12
          %p121 = scmp.lt.s32.totalorder %s120, 7
          %s122 = scalar_select %p121, %s120, 7
          %s123 = smul.addr %s122, 8
          %s124 = scalar_lea.vmem %s0, %s123
          %s125 = smul.u32 4, %s12
        $region24: #{tpu_custom_call.1} parent=19 // pred_fallthru
          _
      $region20: #{tpu_custom_call.1} parent=5 // pred_fallthru
        _
      %p126 = scmp.le.s32.totalorder 1, %s12
      %p127 = scmp.lt.s32.totalorder %s12, 3
      %p128 = pnand %p126, %p127
      %p129 = pneg %p128
      // Predicated region
      $region25: #{tpu_custom_call.1} parent=5 // pred_check
        _
      $region26: #{tpu_custom_call.1} parent=5 // pred_check_branch
        %131 = sbr.rel (%p128) target = $region28
      $region27: #{tpu_custom_call.1} parent=5 // pred_region
        %s132 = ssub.s32 %s12, 1
        // Predicated region
        $region29: #{tpu_custom_call.1} parent=27 // pred_check
          %p133 = pneg %p59
        $region30: #{tpu_custom_call.1} parent=27 // pred_check_branch
          %135 = sbr.rel (%p133) target = $region32
        $region31: #{tpu_custom_call.1} parent=27 // pred_region
          %136 = dma.done [#allocation3], 8192
        $region32: #{tpu_custom_call.1} parent=27 // pred_fallthru
          _
        %s137 = smul.u32 4, %s17
        %p138 = scmp.lt.s32.totalorder %s137, 7
        %s139 = scalar_select %p138, %s137, 7
        %s140 = smul.addr %s139, 8
        %s141 = scalar_lea.vmem %s0, %s140
        %p142 = pneg %p38
        %p143 = pneg %p35
        %p144 = pneg %p59
        %p145 = pneg %p56
        %p146 = pneg %p85
        %p147 = pneg %p82
        %s148 = sand.u32 %s72, 1
        %s149 = scalar_lea.sflag [#allocation4], %s148
        %s150 = sand.u32 %s72, 1
        %s151 = smul.addr %s150, 32
        %s152 = scalar_lea.vmem [#allocation5], %s151
        %s153 = smul.u32 4, %s17
        %p154 = scmp.lt.s32.totalorder %s153, 7
        %s155 = scalar_select %p154, %s153, 7
        %s156 = smul.addr %s155, 8
        %s157 = scalar_lea.vmem %s0, %s156
        %s158 = smul.u32 4, %s17
        %s159 = smul.u32 4, %s17
        %v160 = vlaneseq
        %v161 = vand.u32 %v160, 127
        %v162 = vld [vmem:[%s157] sm:$0xff]
        %v163 = vld [vmem:[%s157 + $0x8] sm:$0xff]
        %v164 = vld [vmem:[%s157 + $0x10] sm:$0xff]
        %v165 = vld [vmem:[%s157 + $0x18] sm:$0xff]
        %166 = vset.pattern.permute.xlu0 0
        %167 = vperm.xlu0 %166, %v162
        %v168 = vpop.permute.xlu0 %167
        %169 = vset.pattern.permute.xlu0 0
        %170 = vperm.xlu0 %169, %v163
        %v171 = vpop.permute.xlu0 %170
        %172 = vset.pattern.permute.xlu0 0
        %173 = vperm.xlu0 %172, %v164
        %v174 = vpop.permute.xlu0 %173
        %175 = vset.pattern.permute.xlu0 0
        %176 = vperm.xlu0 %175, %v165
        %v177 = vpop.permute.xlu0 %176
        %vm178 = vcmp.eq.s32.totalorder %v168, %v161
        %vm179 = vcmp.eq.s32.totalorder %v171, %v161
        %vm180 = vcmp.eq.s32.totalorder %v174, %v161
        %vm181 = vcmp.eq.s32.totalorder %v177, %v161
        %v182 = vsel %vm178, 1, 0
        %v183 = vsel %vm179, 1, 0
        %v184 = vsel %vm180, 1, 0
        %v185 = vsel %vm181, 1, 0
        %186 = vset.pattern.permute.xlu0 1
        %187 = vperm.xlu0 %186, %v162
        %v188 = vpop.permute.xlu0 %187
        %189 = vset.pattern.permute.xlu0 1
        %190 = vperm.xlu0 %189, %v163
        %v191 = vpop.permute.xlu0 %190
        %192 = vset.pattern.permute.xlu0 1
        %193 = vperm.xlu0 %192, %v164
        %v194 = vpop.permute.xlu0 %193
        %195 = vset.pattern.permute.xlu0 1
        %196 = vperm.xlu0 %195, %v165
        %v197 = vpop.permute.xlu0 %196
        %vm198 = vcmp.eq.s32.totalorder %v188, %v161
        %vm199 = vcmp.eq.s32.totalorder %v191, %v161
        %vm200 = vcmp.eq.s32.totalorder %v194, %v161
        %vm201 = vcmp.eq.s32.totalorder %v197, %v161
        %v202 = vsel %vm198, 1, 0
        %v203 = vsel %vm199, 1, 0
        %v204 = vsel %vm200, 1, 0
        %v205 = vsel %vm201, 1, 0
        %v206 = vadd.s32 %v182, %v202
        %v207 = vadd.s32 %v183, %v203
        %v208 = vadd.s32 %v184, %v204
        %v209 = vadd.s32 %v185, %v205
        %210 = vset.pattern.permute.xlu0 2
        %211 = vperm.xlu0 %210, %v162
        %v212 = vpop.permute.xlu0 %211
        %213 = vset.pattern.permute.xlu0 2
        %214 = vperm.xlu0 %213, %v163
        %v215 = vpop.permute.xlu0 %214
        %216 = vset.pattern.permute.xlu0 2
        %217 = vperm.xlu0 %216, %v164
        %v218 = vpop.permute.xlu0 %217
        %219 = vset.pattern.permute.xlu0 2
        %220 = vperm.xlu0 %219, %v165
        %v221 = vpop.permute.xlu0 %220
        %vm222 = vcmp.eq.s32.totalorder %v212, %v161
        %vm223 = vcmp.eq.s32.totalorder %v215, %v161
        %vm224 = vcmp.eq.s32.totalorder %v218, %v161
        %vm225 = vcmp.eq.s32.totalorder %v221, %v161
        %v226 = vsel %vm222, 1, 0
        %v227 = vsel %vm223, 1, 0
        %v228 = vsel %vm224, 1, 0
        %v229 = vsel %vm225, 1, 0
        %v230 = vadd.s32 %v206, %v226
        %v231 = vadd.s32 %v207, %v227
        %v232 = vadd.s32 %v208, %v228
        %v233 = vadd.s32 %v209, %v229
        %v234 = vcvt.s32.f32 %v230
        %v235 = vcvt.s32.f32 %v231
        %v236 = vcvt.s32.f32 %v232
        %v237 = vcvt.s32.f32 %v233
        %238 = vset.pattern.permute.xlu0 3
        %239 = vperm.xlu0 %238, %v162
        %v240 = vpop.permute.xlu0 %239
        %241 = vset.pattern.permute.xlu0 3
        %242 = vperm.xlu0 %241, %v163
        %v243 = vpop.permute.xlu0 %242
        %244 = vset.pattern.permute.xlu0 3
        %245 = vperm.xlu0 %244, %v164
        %v246 = vpop.permute.xlu0 %245
        %247 = vset.pattern.permute.xlu0 3
        %248 = vperm.xlu0 %247, %v165
        %v249 = vpop.permute.xlu0 %248
        %vm250 = vcmp.eq.s32.totalorder %v240, %v161
        %vm251 = vcmp.eq.s32.totalorder %v243, %v161
        %vm252 = vcmp.eq.s32.totalorder %v246, %v161
        %vm253 = vcmp.eq.s32.totalorder %v249, %v161
        %v254 = vsel %vm250, 1, 0
        %v255 = vsel %vm251, 1, 0
        %v256 = vsel %vm252, 1, 0
        %v257 = vsel %vm253, 1, 0
        %258 = vset.pattern.permute.xlu0 4
        %259 = vperm.xlu0 %258, %v162
        %v260 = vpop.permute.xlu0 %259
        %261 = vset.pattern.permute.xlu0 4
        %262 = vperm.xlu0 %261, %v163
        %v263 = vpop.permute.xlu0 %262
        %264 = vset.pattern.permute.xlu0 4
        %265 = vperm.xlu0 %264, %v164
        %v266 = vpop.permute.xlu0 %265
        %267 = vset.pattern.permute.xlu0 4
        %268 = vperm.xlu0 %267, %v165
        %v269 = vpop.permute.xlu0 %268
        %vm270 = vcmp.eq.s32.totalorder %v260, %v161
        %vm271 = vcmp.eq.s32.totalorder %v263, %v161
        %vm272 = vcmp.eq.s32.totalorder %v266, %v161
        %vm273 = vcmp.eq.s32.totalorder %v269, %v161
        %v274 = vsel %vm270, 1, 0
        %v275 = vsel %vm271, 1, 0
        %v276 = vsel %vm272, 1, 0
        %v277 = vsel %vm273, 1, 0
        %v278 = vadd.s32 %v254, %v274
        %v279 = vadd.s32 %v255, %v275
        %v280 = vadd.s32 %v256, %v276
        %v281 = vadd.s32 %v257, %v277
        %282 = vset.pattern.permute.xlu0 5
        %283 = vperm.xlu0 %282, %v162
        %v284 = vpop.permute.xlu0 %283
        %285 = vset.pattern.permute.xlu0 5
        %286 = vperm.xlu0 %285, %v163
        %v287 = vpop.permute.xlu0 %286
        %288 = vset.pattern.permute.xlu0 5
        %289 = vperm.xlu0 %288, %v164
        %v290 = vpop.permute.xlu0 %289
        %291 = vset.pattern.permute.xlu0 5
        %292 = vperm.xlu0 %291, %v165
        %v293 = vpop.permute.xlu0 %292
        %vm294 = vcmp.eq.s32.totalorder %v284, %v161
        %vm295 = vcmp.eq.s32.totalorder %v287, %v161
        %vm296 = vcmp.eq.s32.totalorder %v290, %v161
        %vm297 = vcmp.eq.s32.totalorder %v293, %v161
        %v298 = vsel %vm294, 1, 0
        %v299 = vsel %vm295, 1, 0
        %v300 = vsel %vm296, 1, 0
        %v301 = vsel %vm297, 1, 0
        %v302 = vadd.s32 %v278, %v298
        %v303 = vadd.s32 %v279, %v299
        %v304 = vadd.s32 %v280, %v300
        %v305 = vadd.s32 %v281, %v301
        %v306 = vcvt.s32.f32 %v302
        %v307 = vcvt.s32.f32 %v303
        %v308 = vcvt.s32.f32 %v304
        %v309 = vcvt.s32.f32 %v305
        %310 = vset.pattern.permute.xlu0 6
        %311 = vperm.xlu0 %310, %v162
        %v312 = vpop.permute.xlu0 %311
        %313 = vset.pattern.permute.xlu0 6
        %314 = vperm.xlu0 %313, %v163
        %v315 = vpop.permute.xlu0 %314
        %316 = vset.pattern.permute.xlu0 6
        %317 = vperm.xlu0 %316, %v164
        %v318 = vpop.permute.xlu0 %317
        %319 = vset.pattern.permute.xlu0 6
        %320 = vperm.xlu0 %319, %v165
        %v321 = vpop.permute.xlu0 %320
        %vm322 = vcmp.eq.s32.totalorder %v312, %v161
        %vm323 = vcmp.eq.s32.totalorder %v315, %v161
        %vm324 = vcmp.eq.s32.totalorder %v318, %v161
        %vm325 = vcmp.eq.s32.totalorder %v321, %v161
        %v326 = vsel %vm322, 1, 0
        %v327 = vsel %vm323, 1, 0
        %v328 = vsel %vm324, 1, 0
        %v329 = vsel %vm325, 1, 0
        %330 = vset.pattern.permute.xlu0 7
        %331 = vperm.xlu0 %330, %v162
        %v332 = vpop.permute.xlu0 %331
        %333 = vset.pattern.permute.xlu0 7
        %334 = vperm.xlu0 %333, %v163
        %v335 = vpop.permute.xlu0 %334
        %336 = vset.pattern.permute.xlu0 7
        %337 = vperm.xlu0 %336, %v164
        %v338 = vpop.permute.xlu0 %337
        %339 = vset.pattern.permute.xlu0 7
        %340 = vperm.xlu0 %339, %v165
        %v341 = vpop.permute.xlu0 %340
        %vm342 = vcmp.eq.s32.totalorder %v332, %v161
        %vm343 = vcmp.eq.s32.totalorder %v335, %v161
        %vm344 = vcmp.eq.s32.totalorder %v338, %v161
        %vm345 = vcmp.eq.s32.totalorder %v341, %v161
        %v346 = vsel %vm342, 1, 0
        %v347 = vsel %vm343, 1, 0
        %v348 = vsel %vm344, 1, 0
        %v349 = vsel %vm345, 1, 0
        %v350 = vadd.s32 %v326, %v346
        %v351 = vadd.s32 %v327, %v347
        %v352 = vadd.s32 %v328, %v348
        %v353 = vadd.s32 %v329, %v349
        %354 = vset.pattern.permute.xlu0 8
        %355 = vperm.xlu0 %354, %v162
        %v356 = vpop.permute.xlu0 %355
        %357 = vset.pattern.permute.xlu0 8
        %358 = vperm.xlu0 %357, %v163
        %v359 = vpop.permute.xlu0 %358
        %360 = vset.pattern.permute.xlu0 8
        %361 = vperm.xlu0 %360, %v164
        %v362 = vpop.permute.xlu0 %361
        %363 = vset.pattern.permute.xlu0 8
        %364 = vperm.xlu0 %363, %v165
        %v365 = vpop.permute.xlu0 %364
        %vm366 = vcmp.eq.s32.totalorder %v356, %v161
        %vm367 = vcmp.eq.s32.totalorder %v359, %v161
        %vm368 = vcmp.eq.s32.totalorder %v362, %v161
        %vm369 = vcmp.eq.s32.totalorder %v365, %v161
        %v370 = vsel %vm366, 1, 0
        %v371 = vsel %vm367, 1, 0
        %v372 = vsel %vm368, 1, 0
        %v373 = vsel %vm369, 1, 0
        %v374 = vadd.s32 %v350, %v370
        %v375 = vadd.s32 %v351, %v371
        %v376 = vadd.s32 %v352, %v372
        %v377 = vadd.s32 %v353, %v373
        %v378 = vcvt.s32.f32 %v374
        %v379 = vcvt.s32.f32 %v375
        %v380 = vcvt.s32.f32 %v376
        %v381 = vcvt.s32.f32 %v377
        %382 = vset.pattern.permute.xlu0 9
        %383 = vperm.xlu0 %382, %v162
        %v384 = vpop.permute.xlu0 %383
        %385 = vset.pattern.permute.xlu0 9
        %386 = vperm.xlu0 %385, %v163
        %v387 = vpop.permute.xlu0 %386
        %388 = vset.pattern.permute.xlu0 9
        %389 = vperm.xlu0 %388, %v164
        %v390 = vpop.permute.xlu0 %389
        %391 = vset.pattern.permute.xlu0 9
        %392 = vperm.xlu0 %391, %v165
        %v393 = vpop.permute.xlu0 %392
        %vm394 = vcmp.eq.s32.totalorder %v384, %v161
        %vm395 = vcmp.eq.s32.totalorder %v387, %v161
        %vm396 = vcmp.eq.s32.totalorder %v390, %v161
        %vm397 = vcmp.eq.s32.totalorder %v393, %v161
        %v398 = vsel %vm394, 1, 0
        %v399 = vsel %vm395, 1, 0
        %v400 = vsel %vm396, 1, 0
        %v401 = vsel %vm397, 1, 0
        %402 = vset.pattern.permute.xlu0 10
        %403 = vperm.xlu0 %402, %v162
        %v404 = vpop.permute.xlu0 %403
        %405 = vset.pattern.permute.xlu0 10
        %406 = vperm.xlu0 %405, %v163
        %v407 = vpop.permute.xlu0 %406
        %408 = vset.pattern.permute.xlu0 10
        %409 = vperm.xlu0 %408, %v164
        %v410 = vpop.permute.xlu0 %409
        %411 = vset.pattern.permute.xlu0 10
        %412 = vperm.xlu0 %411, %v165
        %v413 = vpop.permute.xlu0 %412
        %vm414 = vcmp.eq.s32.totalorder %v404, %v161
        %vm415 = vcmp.eq.s32.totalorder %v407, %v161
        %vm416 = vcmp.eq.s32.totalorder %v410, %v161
        %vm417 = vcmp.eq.s32.totalorder %v413, %v161
        %v418 = vsel %vm414, 1, 0
        %v419 = vsel %vm415, 1, 0
        %v420 = vsel %vm416, 1, 0
        %v421 = vsel %vm417, 1, 0
        %v422 = vadd.s32 %v398, %v418
        %v423 = vadd.s32 %v399, %v419
        %v424 = vadd.s32 %v400, %v420
        %v425 = vadd.s32 %v401, %v421
        %426 = vset.pattern.permute.xlu0 11
        %427 = vperm.xlu0 %426, %v162
        %v428 = vpop.permute.xlu0 %427
        %429 = vset.pattern.permute.xlu0 11
        %430 = vperm.xlu0 %429, %v163
        %v431 = vpop.permute.xlu0 %430
        %432 = vset.pattern.permute.xlu0 11
        %433 = vperm.xlu0 %432, %v164
        %v434 = vpop.permute.xlu0 %433
        %435 = vset.pattern.permute.xlu0 11
        %436 = vperm.xlu0 %435, %v165
        %v437 = vpop.permute.xlu0 %436
        %vm438 = vcmp.eq.s32.totalorder %v428, %v161
        %vm439 = vcmp.eq.s32.totalorder %v431, %v161
        %vm440 = vcmp.eq.s32.totalorder %v434, %v161
        %vm441 = vcmp.eq.s32.totalorder %v437, %v161
        %v442 = vsel %vm438, 1, 0
        %v443 = vsel %vm439, 1, 0
        %v444 = vsel %vm440, 1, 0
        %v445 = vsel %vm441, 1, 0
        %v446 = vadd.s32 %v422, %v442
        %v447 = vadd.s32 %v423, %v443
        %v448 = vadd.s32 %v424, %v444
        %v449 = vadd.s32 %v425, %v445
        %v450 = vcvt.s32.f32 %v446
        %v451 = vcvt.s32.f32 %v447
        %v452 = vcvt.s32.f32 %v448
        %v453 = vcvt.s32.f32 %v449
        %v454 = vld [vmem:[#allocation2] sm:$0xff]
        %v455 = vld [vmem:[#allocation2 + $0x8] sm:$0xff]
        %v456 = vld [vmem:[#allocation2 + $0x10] sm:$0xff]
        %v457 = vld [vmem:[#allocation2 + $0x18] sm:$0xff]
        %v458 = vld [vmem:[#allocation2 + $0x20] sm:$0xff]
        %v459 = vld [vmem:[#allocation2 + $0x28] sm:$0xff]
        %v460 = vld [vmem:[#allocation2 + $0x30] sm:$0xff]
        %v461 = vld [vmem:[#allocation2 + $0x38] sm:$0xff]
        %v462 = vld [vmem:[#allocation2 + $0x40] sm:$0xff]
        %v463 = vld [vmem:[#allocation2 + $0x48] sm:$0xff]
        %v464 = vld [vmem:[#allocation2 + $0x50] sm:$0xff]
        %v465 = vld [vmem:[#allocation2 + $0x58] sm:$0xff]
        %v466 = vld [vmem:[#allocation2 + $0x60] sm:$0xff]
        %v467 = vld [vmem:[#allocation2 + $0x68] sm:$0xff]
        %v468 = vld [vmem:[#allocation2 + $0x70] sm:$0xff]
        %v469 = vld [vmem:[#allocation2 + $0x78] sm:$0xff]
        %v470 = vld [vmem:[#allocation2 + $0x80] sm:$0xff]
        %v471 = vld [vmem:[#allocation2 + $0x88] sm:$0xff]
        %v472 = vld [vmem:[#allocation2 + $0x90] sm:$0xff]
        %v473 = vld [vmem:[#allocation2 + $0x98] sm:$0xff]
        %v474 = vld [vmem:[#allocation2 + $0xa0] sm:$0xff]
        %v475 = vld [vmem:[#allocation2 + $0xa8] sm:$0xff]
        %v476 = vld [vmem:[#allocation2 + $0xb0] sm:$0xff]
        %v477 = vld [vmem:[#allocation2 + $0xb8] sm:$0xff]
        %v478 = vld [vmem:[#allocation2 + $0xc0] sm:$0xff]
        %v479 = vld [vmem:[#allocation2 + $0xc8] sm:$0xff]
        %v480 = vld [vmem:[#allocation2 + $0xd0] sm:$0xff]
        %v481 = vld [vmem:[#allocation2 + $0xd8] sm:$0xff]
        %v482 = vld [vmem:[#allocation2 + $0xe0] sm:$0xff]
        %v483 = vld [vmem:[#allocation2 + $0xe8] sm:$0xff]
        %v484 = vld [vmem:[#allocation2 + $0xf0] sm:$0xff]
        %v485 = vld [vmem:[#allocation2 + $0xf8] sm:$0xff]
        %v486 = vld [vmem:[#allocation2 + $0x100] sm:$0xff]
        %v487 = vld [vmem:[#allocation2 + $0x108] sm:$0xff]
        %v488 = vld [vmem:[#allocation2 + $0x110] sm:$0xff]
        %v489 = vld [vmem:[#allocation2 + $0x118] sm:$0xff]
        %v490 = vld [vmem:[#allocation2 + $0x120] sm:$0xff]
        %v491 = vld [vmem:[#allocation2 + $0x128] sm:$0xff]
        %v492 = vld [vmem:[#allocation2 + $0x130] sm:$0xff]
        %v493 = vld [vmem:[#allocation2 + $0x138] sm:$0xff]
        %v494 = vld [vmem:[#allocation2 + $0x140] sm:$0xff]
        %v495 = vld [vmem:[#allocation2 + $0x148] sm:$0xff]
        %v496 = vld [vmem:[#allocation2 + $0x150] sm:$0xff]
        %v497 = vld [vmem:[#allocation2 + $0x158] sm:$0xff]
        %v498 = vld [vmem:[#allocation2 + $0x160] sm:$0xff]
        %v499 = vld [vmem:[#allocation2 + $0x168] sm:$0xff]
        %v500 = vld [vmem:[#allocation2 + $0x170] sm:$0xff]
        %v501 = vld [vmem:[#allocation2 + $0x178] sm:$0xff]
        %v502 = vld [vmem:[#allocation2 + $0x180] sm:$0xff]
        %v503 = vld [vmem:[#allocation2 + $0x188] sm:$0xff]
        %v504 = vld [vmem:[#allocation2 + $0x190] sm:$0xff]
        %v505 = vld [vmem:[#allocation2 + $0x198] sm:$0xff]
        %v506 = vld [vmem:[#allocation2 + $0x1a0] sm:$0xff]
        %v507 = vld [vmem:[#allocation2 + $0x1a8] sm:$0xff]
        %v508 = vld [vmem:[#allocation2 + $0x1b0] sm:$0xff]
        %v509 = vld [vmem:[#allocation2 + $0x1b8] sm:$0xff]
        %v510 = vld [vmem:[#allocation2 + $0x1c0] sm:$0xff]
        %v511 = vld [vmem:[#allocation2 + $0x1c8] sm:$0xff]
        %v512 = vld [vmem:[#allocation2 + $0x1d0] sm:$0xff]
        %v513 = vld [vmem:[#allocation2 + $0x1d8] sm:$0xff]
        %v514 = vld [vmem:[#allocation2 + $0x1e0] sm:$0xff]
        %v515 = vld [vmem:[#allocation2 + $0x1e8] sm:$0xff]
        %v516 = vld [vmem:[#allocation2 + $0x1f0] sm:$0xff]
        %v517 = vld [vmem:[#allocation2 + $0x1f8] sm:$0xff]
        %518 = vmatprep.subr.mxu0 0.0
        %519 = vmatpush1.msra.mxu0 %v454
        %520 = vmatprep.subr.mxu0 0.0
        %521 = vmatpush1.msra.mxu0 %v455
        %522 = vmatprep.subr.mxu0 0.0
        %523 = vmatpush1.msra.mxu0 %v456
        %524 = vmatprep.subr.mxu0 0.0
        %525 = vmatpush1.msra.mxu0 %v457
        %526 = vmatprep.subr.mxu0 0.0
        %527 = vmatpush1.msra.mxu0 %v458
        %528 = vmatprep.subr.mxu0 0.0
        %529 = vmatpush1.msra.mxu0 %v459
        %530 = vmatprep.subr.mxu0 0.0
        %531 = vmatpush1.msra.mxu0 %v460
        %532 = vmatprep.subr.mxu0 0.0
        %533 = vmatpush1.msra.mxu0 %v461
        %534 = vmatprep.subr.mxu0 0.0
        %535 = vmatpush1.msra.mxu0 %v462
        %536 = vmatprep.subr.mxu0 0.0
        %537 = vmatpush1.msra.mxu0 %v463
        %538 = vmatprep.subr.mxu0 0.0
        %539 = vmatpush1.msra.mxu0 %v464
        %540 = vmatprep.subr.mxu0 0.0
        %541 = vmatpush1.msra.mxu0 %v465
        %542 = vmatprep.subr.mxu0 0.0
        %543 = vmatpush1.msra.mxu0 %v466
        %544 = vmatprep.subr.mxu0 0.0
        %545 = vmatpush1.msra.mxu0 %v467
        %546 = vmatprep.subr.mxu0 0.0
        %547 = vmatpush1.msra.mxu0 %v468
        %548 = vmatprep.subr.mxu0 0.0
        %549 = vmatpush1.msra.mxu0 %v469
        %550 = vmatprep.subr.mxu0 0.0
        %551 = vmatpush1.msra.mxu0 %v470
        %552 = vmatprep.subr.mxu0 0.0
        %553 = vmatpush1.msra.mxu0 %v471
        %554 = vmatprep.subr.mxu0 0.0
        %555 = vmatpush1.msra.mxu0 %v472
        %556 = vmatprep.subr.mxu0 0.0
        %557 = vmatpush1.msra.mxu0 %v473
        %558 = vmatprep.subr.mxu0 0.0
        %559 = vmatpush1.msra.mxu0 %v474
        %560 = vmatprep.subr.mxu0 0.0
        %561 = vmatpush1.msra.mxu0 %v475
        %562 = vmatprep.subr.mxu0 0.0
        %563 = vmatpush1.msra.mxu0 %v476
        %564 = vmatprep.subr.mxu0 0.0
        %565 = vmatpush1.msra.mxu0 %v477
        %566 = vmatprep.subr.mxu0 0.0
        %567 = vmatpush1.msra.mxu0 %v478
        %568 = vmatprep.subr.mxu0 0.0
        %569 = vmatpush1.msra.mxu0 %v479
        %570 = vmatprep.subr.mxu0 0.0
        %571 = vmatpush1.msra.mxu0 %v480
        %572 = vmatprep.subr.mxu0 0.0
        %573 = vmatpush1.msra.mxu0 %v481
        %574 = vmatprep.subr.mxu0 0.0
        %575 = vmatpush1.msra.mxu0 %v482
        %576 = vmatprep.subr.mxu0 0.0
        %577 = vmatpush1.msra.mxu0 %v483
        %578 = vmatprep.subr.mxu0 0.0
        %579 = vmatpush1.msra.mxu0 %v484
        %580 = vmatprep.subr.mxu0 0.0
        %581 = vmatpush1.msra.mxu0 %v485
        %582 = vmatprep.mubr.f32.mxu0 %v306
        %583 = vmatmul.mubr.f32.gmra.mrb[0].mxu0 %v234
        %v584 = vpop.f32.mrb[0].mxu0
        %v585 = vadd.f32 0.0, %v584
        %v586 = vpop.f32.mrb[0].mxu0
        %587 = vmatprep.mubr.f32.mxu0 %v307
        %588 = vmatmul.mubr.f32.gmra.mrb[0].mxu0 %v235
        %v589 = vpop.f32.mrb[0].mxu0
        %v590 = vadd.f32 0.0, %v589
        %v591 = vpop.f32.mrb[0].mxu0
        %592 = vmatprep.mubr.f32.mxu0 %v308
        %593 = vmatmul.mubr.f32.gmra.mrb[0].mxu0 %v236
        %v594 = vpop.f32.mrb[0].mxu0
        %v595 = vadd.f32 0.0, %v594
        %v596 = vpop.f32.mrb[0].mxu0
        %597 = vmatprep.mubr.f32.mxu0 %v309
        %598 = vmatmul.mubr.f32.gmra.mrb[0].mxu0 %v237
        %v599 = vpop.f32.mrb[0].mxu0
        %v600 = vadd.f32 0.0, %v599
        %v601 = vpop.f32.mrb[0].mxu0
        %602 = vdwg.mxu0
        %603 = vmatprep.subr.mxu0 0.0
        %604 = vmatpush1.msra.mxu0 %v486
        %605 = vmatprep.subr.mxu0 0.0
        %606 = vmatpush1.msra.mxu0 %v487
        %607 = vmatprep.subr.mxu0 0.0
        %608 = vmatpush1.msra.mxu0 %v488
        %609 = vmatprep.subr.mxu0 0.0
        %610 = vmatpush1.msra.mxu0 %v489
        %611 = vmatprep.subr.mxu0 0.0
        %612 = vmatpush1.msra.mxu0 %v490
        %613 = vmatprep.subr.mxu0 0.0
        %614 = vmatpush1.msra.mxu0 %v491
        %615 = vmatprep.subr.mxu0 0.0
        %616 = vmatpush1.msra.mxu0 %v492
        %617 = vmatprep.subr.mxu0 0.0
        %618 = vmatpush1.msra.mxu0 %v493
        %619 = vmatprep.subr.mxu0 0.0
        %620 = vmatpush1.msra.mxu0 %v494
        %621 = vmatprep.subr.mxu0 0.0
        %622 = vmatpush1.msra.mxu0 %v495
        %623 = vmatprep.subr.mxu0 0.0
        %624 = vmatpush1.msra.mxu0 %v496
        %625 = vmatprep.subr.mxu0 0.0
        %626 = vmatpush1.msra.mxu0 %v497
        %627 = vmatprep.subr.mxu0 0.0
        %628 = vmatpush1.msra.mxu0 %v498
        %629 = vmatprep.subr.mxu0 0.0
        %630 = vmatpush1.msra.mxu0 %v499
        %631 = vmatprep.subr.mxu0 0.0
        %632 = vmatpush1.msra.mxu0 %v500
        %633 = vmatprep.subr.mxu0 0.0
        %634 = vmatpush1.msra.mxu0 %v501
        %635 = vmatprep.subr.mxu0 0.0
        %636 = vmatpush1.msra.mxu0 %v502
        %637 = vmatprep.subr.mxu0 0.0
        %638 = vmatpush1.msra.mxu0 %v503
        %639 = vmatprep.subr.mxu0 0.0
        %640 = vmatpush1.msra.mxu0 %v504
        %641 = vmatprep.subr.mxu0 0.0
        %642 = vmatpush1.msra.mxu0 %v505
        %643 = vmatprep.subr.mxu0 0.0
        %644 = vmatpush1.msra.mxu0 %v506
        %645 = vmatprep.subr.mxu0 0.0
        %646 = vmatpush1.msra.mxu0 %v507
        %647 = vmatprep.subr.mxu0 0.0
        %648 = vmatpush1.msra.mxu0 %v508
        %649 = vmatprep.subr.mxu0 0.0
        %650 = vmatpush1.msra.mxu0 %v509
        %651 = vmatprep.subr.mxu0 0.0
        %652 = vmatpush1.msra.mxu0 %v510
        %653 = vmatprep.subr.mxu0 0.0
        %654 = vmatpush1.msra.mxu0 %v511
        %655 = vmatprep.subr.mxu0 0.0
        %656 = vmatpush1.msra.mxu0 %v512
        %657 = vmatprep.subr.mxu0 0.0
        %658 = vmatpush1.msra.mxu0 %v513
        %659 = vmatprep.subr.mxu0 0.0
        %660 = vmatpush1.msra.mxu0 %v514
        %661 = vmatprep.subr.mxu0 0.0
        %662 = vmatpush1.msra.mxu0 %v515
        %663 = vmatprep.subr.mxu0 0.0
        %664 = vmatpush1.msra.mxu0 %v516
        %665 = vmatprep.subr.mxu0 0.0
        %666 = vmatpush1.msra.mxu0 %v517
        %667 = vmatprep.mubr.f32.mxu0 %v450
        %668 = vmatmul.mubr.f32.gmra.mrb[0].mxu0 %v378
        %v669 = vpop.f32.mrb[0].mxu0
        %v670 = vadd.f32 %v585, %v669
        %v671 = vpop.f32.mrb[0].mxu0
        %672 = vmatprep.mubr.f32.mxu0 %v451
        %673 = vmatmul.mubr.f32.gmra.mrb[0].mxu0 %v379
        %v674 = vpop.f32.mrb[0].mxu0
        %v675 = vadd.f32 %v590, %v674
        %v676 = vpop.f32.mrb[0].mxu0
        %677 = vmatprep.mubr.f32.mxu0 %v452
        %678 = vmatmul.mubr.f32.gmra.mrb[0].mxu0 %v380
        %v679 = vpop.f32.mrb[0].mxu0
        %v680 = vadd.f32 %v595, %v679
        %v681 = vpop.f32.mrb[0].mxu0
        %682 = vmatprep.mubr.f32.mxu0 %v453
        %683 = vmatmul.mubr.f32.gmra.mrb[0].mxu0 %v381
        %v684 = vpop.f32.mrb[0].mxu0
        %v685 = vadd.f32 %v600, %v684
        %v686 = vpop.f32.mrb[0].mxu0
        %687 = vdwg.mxu0
        %688 = vst [vmem:[%s152] sm:$0xff] %v670
        %689 = vst [vmem:[%s152 + $0x8] sm:$0xff] %v675
        %690 = vst [vmem:[%s152 + $0x10] sm:$0xff] %v680
        %691 = vst [vmem:[%s152 + $0x18] sm:$0xff] %v685
        %s692 = sand.u32 %s72, 1
        %s693 = scalar_lea.sflag [#allocation4], %s692
        %s694 = sand.u32 %s72, 1
        %s695 = smul.addr %s694, 32
        %s696 = scalar_lea.vmem [#allocation5], %s695
        // Predicated region
        $region33: #{tpu_custom_call.1} parent=27 // pred_check
          %p697 = pneg %p82
        $region34: #{tpu_custom_call.1} parent=27 // pred_check_branch
          %699 = sbr.rel (%p697) target = $region36
        $region35: #{tpu_custom_call.1} parent=27 // pred_region
          %s700 = smul.u32 4, %s17
          %s702 = ssub.s32 512, 512
          %703 = vsyncadd %s693, %s702
          %s704 = smul.addr %s700, 128
          %s705 = scalar_lea.hbm %s2, %s704
          %s706 = sshll.u32 %s696, 4
          %s707 = int_to_ptr.vmem [resolvable:$true] %s706
          %712 = dma.vmem_to_hbm [thread:$0]  %s707, 512, %s705, %s693, 128, 128, 8
        $region36: #{tpu_custom_call.1} parent=27 // pred_fallthru
          _
      $region28: #{tpu_custom_call.1} parent=5 // pred_fallthru
        _
      %p713 = scmp.le.s32.totalorder 2, %s12
      // Predicated region
      $region37: #{tpu_custom_call.1} parent=5 // pred_check
        %p714 = pneg %p713
      $region38: #{tpu_custom_call.1} parent=5 // pred_check_branch
        %716 = sbr.rel (%p714) target = $region40
      $region39: #{tpu_custom_call.1} parent=5 // pred_region
        %s717 = ssub.s32 %s12, 2
        // Predicated region
        $region41: #{tpu_custom_call.1} parent=39 // pred_check
          %p718 = pneg %p88
        $region42: #{tpu_custom_call.1} parent=39 // pred_check_branch
          %720 = sbr.rel (%p718) target = $region44
        $region43: #{tpu_custom_call.1} parent=39 // pred_region
          %s721 = sand.u32 %s73, 1
          %s722 = scalar_lea.sflag [#allocation4], %s721
          %s723 = sand.u32 %s73, 1
          %s724 = smul.addr %s723, 32
          %s725 = scalar_lea.vmem [#allocation5], %s724
          %726 = dma.done %s722, 512
        $region44: #{tpu_custom_call.1} parent=39 // pred_fallthru
          _
      $region40: #{tpu_custom_call.1} parent=5 // pred_fallthru
        _
    $region6: #{tpu_custom_call.1} parent=1 // loop_footer
      %s16 = sadd.s32 1, %s12
    $region7: #{tpu_custom_call.1} parent=1 // loop_footer_branch
      %11 = sbr.rel target = $region3
    $region8: #{tpu_custom_call.1} parent=1 // loop_exit
      _
    %727 = vsyncpa [#allocation3], 1
    %s728 = scalar_lea.sflag [#allocation3], 1
    %729 = vsyncpa %s728, 1
    %730 = vsyncpa [#allocation4], 1
    %s731 = scalar_lea.sflag [#allocation4], 1
    %732 = vsyncpa %s731, 1

</llo_original>
